<compile_context>
chip_gen: v5e
topology: v5e:2x2
jax: 0.10.0
libtpu: 0.0.40
codegen_flags: <defaults>
</compile_context>

<pallas_src>
import jax
import jax.numpy as jnp
from jax.experimental import pallas as pl
from jax.experimental.pallas import tpu as pltpu


def _round_up(a: int, m: int) -> int:
    return (a + m - 1) // m * m


def qnet_kernel(x_ref, w1_ref, b1_ref, w2_ref, b2_ref, w3_ref, b3_ref, o_ref):
    x = x_ref[...]
    # fc1 + ReLU (f32 operands, f32 accumulation)
    h1 = jnp.dot(x, w1_ref[...], preferred_element_type=jnp.float32)
    h1 = jnp.maximum(h1 + b1_ref[...], 0.0)
    # fc2 + ReLU
    h2 = jnp.dot(h1, w2_ref[...], preferred_element_type=jnp.float32)
    h2 = jnp.maximum(h2 + b2_ref[...], 0.0)
    # fc3 (no activation); narrow out_dim store (full last dim of the output array)
    out = jnp.dot(h2, w3_ref[...], preferred_element_type=jnp.float32) + b3_ref[...]
    o_ref[...] = out.astype(o_ref.dtype)


def qnet_forward(x, params, *, tb: int = 1024):
    """x: (B, input_dim) float32. params: dict of transposed f32 weights + biases."""
    B, in_dim = x.shape
    out_dim = params["w3"].shape[1]

    # Batch tile: big enough to amortize per-step overhead, capped near B/2
    # (rounded to sublane multiple) so the grid keeps >= 2 steps when possible
    # (v7x megacore split); never below 8.
    half = _round_up(pl.cdiv(B, 2), 8)
    TB = max(8, min(tb, half))
    grid = (pl.cdiv(B, TB),)  # ragged tail handled by Pallas (masked stores)

    w1, b1 = params["w1"], params["b1"]
    w2, b2 = params["w2"], params["b2"]
    w3, b3 = params["w3"], params["b3"]

    # Constant block index -> weights/biases stay resident in VMEM across grid steps.
    resident = lambda arr: pl.BlockSpec(arr.shape, lambda i: (0, 0))

    flops = 2 * B * (in_dim * 128 + 128 * 64 + 64 * out_dim)
    bytes_accessed = (
        x.size * 4                                        # f32 x read
        + (w1.size + w2.size + w3.size) * 4               # f32 weights
        + (b1.size + b2.size + b3.size) * 4               # f32 biases
        + B * out_dim * 4                                 # f32 output write
    )

    out = pl.pallas_call(
        qnet_kernel,
        out_shape=jax.ShapeDtypeStruct((B, out_dim), jnp.float32),
        grid=grid,
        in_specs=[
            pl.BlockSpec((TB, in_dim), lambda i: (i, 0)),  # x: tiled over batch
            resident(w1), resident(b1),
            resident(w2), resident(b2),
            resident(w3), resident(b3),
        ],
        out_specs=pl.BlockSpec((TB, out_dim), lambda i: (i, 0)),
        compiler_params=pltpu.CompilerParams(
            dimension_semantics=("parallel",),
        ),
        cost_estimate=pl.CostEstimate(
            flops=flops, transcendentals=0, bytes_accessed=bytes_accessed),
    )(x, w1, b1, w2, b2, w3, b3)

    return out


def init_qnet_params(key, input_dim, output_dim):
    """Deterministic init mimicking nn.Linear default (uniform +/- 1/sqrt(fan_in)).
    Weights stored transposed: (in_features, out_features). All f32."""
    dims = [(input_dim, 128), (128, 64), (64, output_dim)]
    params = {}
    for i, (fan_in, fan_out) in enumerate(dims, start=1):
        key, kw, kb = jax.random.split(key, 3)
        bound = 1.0 / jnp.sqrt(float(fan_in))
        params[f"w{i}"] = jax.random.uniform(
            kw, (fan_in, fan_out), jnp.float32, -bound, bound)
        params[f"b{i}"] = jax.random.uniform(
            kb, (1, fan_out), jnp.float32, -bound, bound)
    return params


def qnet_reference(x, params):
    """Pure-JAX f32 reference matching the PyTorch module's forward."""
    h1 = jnp.maximum(x @ params["w1"] + params["b1"], 0.0)
    h2 = jnp.maximum(h1 @ params["w2"] + params["b2"], 0.0)
    return h2 @ params["w3"] + params["b3"]


if __name__ == "__main__":
    key = jax.random.PRNGKey(0)
    batch, input_dim, output_dim = 8, 32, 4

    key, kx = jax.random.split(key)
    x = jax.random.normal(kx, (batch, input_dim), jnp.float32)
    params = init_qnet_params(key, input_dim, output_dim)

    out = qnet_forward(x, params)
    out = jax.block_until_ready(out)

    ref = qnet_reference(x, params)
    assert out.shape == (batch, output_dim)
    assert jnp.allclose(out, ref, atol=2e-3, rtol=2e-3), "mismatch vs reference"

    print("KERNEL_OK")
</pallas_src>

<mosaic_0001>
module attributes {stable_mosaic.version = 11 : i64} {
  func.func @qnet_kernel(%arg0: i32, %arg1: memref<8x32xf32, #tpu.memory_space<vmem>>, %arg2: memref<32x128xf32, #tpu.memory_space<vmem>>, %arg3: memref<1x128xf32, #tpu.memory_space<vmem>>, %arg4: memref<128x64xf32, #tpu.memory_space<vmem>>, %arg5: memref<1x64xf32, #tpu.memory_space<vmem>>, %arg6: memref<64x4xf32, #tpu.memory_space<vmem>>, %arg7: memref<1x4xf32, #tpu.memory_space<vmem>>, %arg8: memref<8x4xf32, #tpu.memory_space<vmem>>) attributes {dimension_semantics = [#tpu.dimension_semantics<parallel>], iteration_bounds = array<i64: 1>, scalar_prefetch = 0 : i64, scratch_operands = 0 : i64, tpu.core_type = #tpu.core_type<tc>, window_params = [{transform_indices = @transform_0, window_bounds = array<i64: 8, 32>}, {pipeline_mode = #tpu.pipeline_mode<synchronous>, transform_indices = @transform_1, window_bounds = array<i64: 32, 128>}, {pipeline_mode = #tpu.pipeline_mode<synchronous>, transform_indices = @transform_2, window_bounds = array<i64: 1, 128>}, {pipeline_mode = #tpu.pipeline_mode<synchronous>, transform_indices = @transform_3, window_bounds = array<i64: 128, 64>}, {pipeline_mode = #tpu.pipeline_mode<synchronous>, transform_indices = @transform_4, window_bounds = array<i64: 1, 64>}, {pipeline_mode = #tpu.pipeline_mode<synchronous>, transform_indices = @transform_5, window_bounds = array<i64: 64, 4>}, {pipeline_mode = #tpu.pipeline_mode<synchronous>, transform_indices = @transform_6, window_bounds = array<i64: 1, 4>}, {transform_indices = @transform_7, window_bounds = array<i64: 8, 4>}]} {
    %c0 = arith.constant 0 : index
    %c0_0 = arith.constant 0 : index
    %0 = vector.load %arg1[%c0, %c0_0] : memref<8x32xf32, #tpu.memory_space<vmem>>, vector<8x32xf32>
    %c0_1 = arith.constant 0 : index
    %c0_2 = arith.constant 0 : index
    %1 = vector.load %arg2[%c0_1, %c0_2] : memref<32x128xf32, #tpu.memory_space<vmem>>, vector<32x128xf32>
    %cst = arith.constant dense<0.000000e+00> : vector<8x128xf32>
    %2 = tpu.matmul %0, %1, %cst {dimension_numbers = #tpu.dot_dimension_numbers<[1], [0], [0], [1], [0, 0, 1, 1], [], []>} : vector<8x32xf32>, vector<32x128xf32>, vector<8x128xf32> -> vector<8x128xf32>
    %c0_3 = arith.constant 0 : index
    %c0_4 = arith.constant 0 : index
    %3 = vector.load %arg3[%c0_3, %c0_4] : memref<1x128xf32, #tpu.memory_space<vmem>>, vector<1x128xf32>
    %4 = vector.broadcast %3 : vector<1x128xf32> to vector<8x128xf32>
    %5 = arith.addf %2, %4 : vector<8x128xf32>
    %cst_5 = arith.constant 0.000000e+00 : f32
    %6 = vector.broadcast %cst_5 : f32 to vector<8x128xf32>
    %7 = arith.maximumf %5, %6 : vector<8x128xf32>
    %c0_6 = arith.constant 0 : index
    %c0_7 = arith.constant 0 : index
    %8 = vector.load %arg4[%c0_6, %c0_7] : memref<128x64xf32, #tpu.memory_space<vmem>>, vector<128x64xf32>
    %cst_8 = arith.constant dense<0.000000e+00> : vector<8x64xf32>
    %9 = tpu.matmul %7, %8, %cst_8 {dimension_numbers = #tpu.dot_dimension_numbers<[1], [0], [0], [1], [0, 0, 1, 1], [], []>} : vector<8x128xf32>, vector<128x64xf32>, vector<8x64xf32> -> vector<8x64xf32>
    %c0_9 = arith.constant 0 : index
    %c0_10 = arith.constant 0 : index
    %10 = vector.load %arg5[%c0_9, %c0_10] : memref<1x64xf32, #tpu.memory_space<vmem>>, vector<1x64xf32>
    %11 = vector.broadcast %10 : vector<1x64xf32> to vector<8x64xf32>
    %12 = arith.addf %9, %11 : vector<8x64xf32>
    %cst_11 = arith.constant 0.000000e+00 : f32
    %13 = vector.broadcast %cst_11 : f32 to vector<8x64xf32>
    %14 = arith.maximumf %12, %13 : vector<8x64xf32>
    %c0_12 = arith.constant 0 : index
    %c0_13 = arith.constant 0 : index
    %15 = vector.load %arg6[%c0_12, %c0_13] : memref<64x4xf32, #tpu.memory_space<vmem>>, vector<64x4xf32>
    %cst_14 = arith.constant dense<0.000000e+00> : vector<8x4xf32>
    %16 = tpu.matmul %14, %15, %cst_14 {dimension_numbers = #tpu.dot_dimension_numbers<[1], [0], [0], [1], [0, 0, 1, 1], [], []>} : vector<8x64xf32>, vector<64x4xf32>, vector<8x4xf32> -> vector<8x4xf32>
    %c0_15 = arith.constant 0 : index
    %c0_16 = arith.constant 0 : index
    %17 = vector.load %arg7[%c0_15, %c0_16] : memref<1x4xf32, #tpu.memory_space<vmem>>, vector<1x4xf32>
    %18 = vector.broadcast %17 : vector<1x4xf32> to vector<8x4xf32>
    %19 = arith.addf %16, %18 : vector<8x4xf32>
    %c0_17 = arith.constant 0 : index
    %c0_18 = arith.constant 0 : index
    %20 = vector.load %arg8[%c0_17, %c0_18] : memref<8x4xf32, #tpu.memory_space<vmem>>, vector<8x4xf32>
    tpu.vector_store %arg8[%c0_17, %c0_18], %19 {strides = array<i32>} : memref<8x4xf32, #tpu.memory_space<vmem>>, vector<8x4xf32>,
    return
  }
  func.func @transform_0(%arg0: i32) -> (i32, i32) {
    %c0_i32 = arith.constant 0 : i32
    %c0_i32_0 = arith.constant 0 : i32
    return %arg0, %c0_i32 : i32, i32
  }
  func.func @transform_1(%arg0: i32) -> (i32, i32) {
    %c0_i32 = arith.constant 0 : i32
    %c0_i32_0 = arith.constant 0 : i32
    %c0_i32_1 = arith.constant 0 : i32
    return %c0_i32, %c0_i32_0 : i32, i32
  }
  func.func @transform_2(%arg0: i32) -> (i32, i32) {
    %c0_i32 = arith.constant 0 : i32
    %c0_i32_0 = arith.constant 0 : i32
    %c0_i32_1 = arith.constant 0 : i32
    return %c0_i32, %c0_i32_0 : i32, i32
  }
  func.func @transform_3(%arg0: i32) -> (i32, i32) {
    %c0_i32 = arith.constant 0 : i32
    %c0_i32_0 = arith.constant 0 : i32
    %c0_i32_1 = arith.constant 0 : i32
    return %c0_i32, %c0_i32_0 : i32, i32
  }
  func.func @transform_4(%arg0: i32) -> (i32, i32) {
    %c0_i32 = arith.constant 0 : i32
    %c0_i32_0 = arith.constant 0 : i32
    %c0_i32_1 = arith.constant 0 : i32
    return %c0_i32, %c0_i32_0 : i32, i32
  }
  func.func @transform_5(%arg0: i32) -> (i32, i32) {
    %c0_i32 = arith.constant 0 : i32
    %c0_i32_0 = arith.constant 0 : i32
    %c0_i32_1 = arith.constant 0 : i32
    return %c0_i32, %c0_i32_0 : i32, i32
  }
  func.func @transform_6(%arg0: i32) -> (i32, i32) {
    %c0_i32 = arith.constant 0 : i32
    %c0_i32_0 = arith.constant 0 : i32
    %c0_i32_1 = arith.constant 0 : i32
    return %c0_i32, %c0_i32_0 : i32, i32
  }
  func.func @transform_7(%arg0: i32) -> (i32, i32) {
    %c0_i32 = arith.constant 0 : i32
    %c0_i32_0 = arith.constant 0 : i32
    return %arg0, %c0_i32 : i32, i32
  }
}

</mosaic_0001>

<llo_original>
// kernel: tpu_custom_call.1
$region0: #{tpu_custom_call.1}
  #allocation0 [shape = 'u32[]', space=smem, size = 0x4, offset = 0x4, fixed_abs, tag = 'smem constant byte address 0x4 - core index']
  #allocation1 [shape = 'u32[72,128]{1,0:T(1,128)}', space=vmem, size = 0x9000, scoped, tag = 'internal scratch']
  %s0 = inlined_call_operand.vmem [shape: f32[8,32], index: 0, kind: input, shape index: {}]
  %s1 = inlined_call_operand.vmem [shape: f32[32,128], index: 1, kind: input, shape index: {}]
  %s2 = inlined_call_operand.vmem [shape: f32[1,128], index: 2, kind: input, shape index: {}]
  %s3 = inlined_call_operand.vmem [shape: f32[128,64], index: 3, kind: input, shape index: {}]
  %s4 = inlined_call_operand.vmem [shape: f32[1,64], index: 4, kind: input, shape index: {}]
  %s5 = inlined_call_operand.vmem [shape: f32[64,4], index: 5, kind: input, shape index: {}]
  %s6 = inlined_call_operand.vmem [shape: f32[1,4], index: 6, kind: input, shape index: {}]
  %s7 = inlined_call_operand.vmem [shape: f32[8,4], index: 7, kind: output, shape index: {}]
  %s8 = sld [smem:[#allocation0]]
  $region38: #{tpu_custom_call.1} parent=0
    _
  %s10 = ssub.s32 1, %s8
  %s11 = scalar_select 0, %s10, %s8
  // Predicated region
  $region2: #{tpu_custom_call.1} parent=0 // pred_check
    _
  $region3: #{tpu_custom_call.1} parent=0 // pred_check_branch
    %13 = sbr.rel (0) target = $region5
  $region4: #{tpu_custom_call.1} parent=0 // pred_region
    _
  $region5: #{tpu_custom_call.1} parent=0 // pred_fallthru
    _
  // Predicated region
  $region6: #{tpu_custom_call.1} parent=0 // pred_check
    _
  $region7: #{tpu_custom_call.1} parent=0 // pred_check_branch
    %15 = sbr.rel (0) target = $region9
  $region8: #{tpu_custom_call.1} parent=0 // pred_region
    _
  $region9: #{tpu_custom_call.1} parent=0 // pred_fallthru
    _
  // Predicated region
  $region10: #{tpu_custom_call.1} parent=0 // pred_check
    _
  $region11: #{tpu_custom_call.1} parent=0 // pred_check_branch
    %17 = sbr.rel (0) target = $region13
  $region12: #{tpu_custom_call.1} parent=0 // pred_region
    _
  $region13: #{tpu_custom_call.1} parent=0 // pred_fallthru
    _
  // Predicated region
  $region14: #{tpu_custom_call.1} parent=0 // pred_check
    _
  $region15: #{tpu_custom_call.1} parent=0 // pred_check_branch
    %19 = sbr.rel (0) target = $region17
  $region16: #{tpu_custom_call.1} parent=0 // pred_region
    _
  $region17: #{tpu_custom_call.1} parent=0 // pred_fallthru
    _
  // Predicated region
  $region18: #{tpu_custom_call.1} parent=0 // pred_check
    _
  $region19: #{tpu_custom_call.1} parent=0 // pred_check_branch
    %21 = sbr.rel (0) target = $region21
  $region20: #{tpu_custom_call.1} parent=0 // pred_region
    _
  $region21: #{tpu_custom_call.1} parent=0 // pred_fallthru
    _
  // Predicated region
  $region22: #{tpu_custom_call.1} parent=0 // pred_check
    _
  $region23: #{tpu_custom_call.1} parent=0 // pred_check_branch
    %23 = sbr.rel (0) target = $region25
  $region24: #{tpu_custom_call.1} parent=0 // pred_region
    _
  $region25: #{tpu_custom_call.1} parent=0 // pred_fallthru
    _
  // Predicated region
  $region26: #{tpu_custom_call.1} parent=0 // pred_check
    _
  $region27: #{tpu_custom_call.1} parent=0 // pred_check_branch
    %25 = sbr.rel (0) target = $region29
  $region28: #{tpu_custom_call.1} parent=0 // pred_region
    _
  $region29: #{tpu_custom_call.1} parent=0 // pred_fallthru
    _
  %v26 = vld [vmem:[%s0] sm:$0xff]
  %v27 = vld [vmem:[%s1] sm:$0xff]
  %v28 = vld [vmem:[%s1 + $0x8] sm:$0xff]
  %v29 = vld [vmem:[%s1 + $0x10] sm:$0xff]
  %v30 = vld [vmem:[%s1 + $0x18] sm:$0xff]
  %v31 = vld [vmem:[%s2] sm:$0x1]
  %v33 = vperm.slane %v31, 0
  %vm35 = vcmask 261120
  %v37 = vsel %vm35, %v26, 0
  %39 = vmatpush.msra.mxu0 0.0
  %40 = vmatpush.msra.mxu0 0.0
  %41 = vmatpush.msra.mxu0 0.0
  %42 = vmatpush.msra.mxu0 0.0
  %43 = vmatpush.msra.mxu0 0.0
  %44 = vmatpush.msra.mxu0 0.0
  %45 = vmatpush.msra.mxu0 0.0
  %46 = vmatpush.msra.mxu0 0.0
  %47 = vmatpush.msra.mxu0 0.0
  %48 = vmatpush.msra.mxu0 0.0
  %49 = vmatpush.msra.mxu0 0.0
  %50 = vmatpush.msra.mxu0 0.0
  %51 = vmatpush.msra.mxu0 %v30
  %52 = vmatpush.msra.mxu0 %v29
  %53 = vmatpush.msra.mxu0 %v28
  %54 = vmatpush.msra.mxu0 %v27
  %55 = vmatmul.f32.gmra.mxu0 %v37
  %v56 = vpop.f32.mrf.mxu0
  %v57 = vadd.f32 %v33, %v56
  %58 = vdwg.mxu0
  %v59 = vmax.f32 %v57, 0.0
  %v60 = vld [vmem:[%s3] sm:$0xff]
  %v61 = vld [vmem:[%s3 + $0x8] sm:$0xff]
  %v62 = vld [vmem:[%s3 + $0x10] sm:$0xff]
  %v63 = vld [vmem:[%s3 + $0x18] sm:$0xff]
  %v64 = vld [vmem:[%s3 + $0x20] sm:$0xff]
  %v65 = vld [vmem:[%s3 + $0x28] sm:$0xff]
  %v66 = vld [vmem:[%s3 + $0x30] sm:$0xff]
  %v67 = vld [vmem:[%s3 + $0x38] sm:$0xff]
  %v68 = vld [vmem:[%s3 + $0x40] sm:$0xff]
  %v69 = vld [vmem:[%s3 + $0x48] sm:$0xff]
  %v70 = vld [vmem:[%s3 + $0x50] sm:$0xff]
  %v71 = vld [vmem:[%s3 + $0x58] sm:$0xff]
  %v72 = vld [vmem:[%s3 + $0x60] sm:$0xff]
  %v73 = vld [vmem:[%s3 + $0x68] sm:$0xff]
  %v74 = vld [vmem:[%s3 + $0x70] sm:$0xff]
  %v75 = vld [vmem:[%s3 + $0x78] sm:$0xff]
  %v76 = vld [vmem:[%s4] sm:$0x1]
  %v78 = vperm.slane %v76, 0
  %80 = vmatpush.msra.mxu0 %v75
  %81 = vmatpush.msra.mxu0 %v74
  %82 = vmatpush.msra.mxu0 %v73
  %83 = vmatpush.msra.mxu0 %v72
  %84 = vmatpush.msra.mxu0 %v71
  %85 = vmatpush.msra.mxu0 %v70
  %86 = vmatpush.msra.mxu0 %v69
  %87 = vmatpush.msra.mxu0 %v68
  %88 = vmatpush.msra.mxu0 %v67
  %89 = vmatpush.msra.mxu0 %v66
  %90 = vmatpush.msra.mxu0 %v65
  %91 = vmatpush.msra.mxu0 %v64
  %92 = vmatpush.msra.mxu0 %v63
  %93 = vmatpush.msra.mxu0 %v62
  %94 = vmatpush.msra.mxu0 %v61
  %95 = vmatpush.msra.mxu0 %v60
  %96 = vmatmul.f32.gmra.mxu0 %v59
  %v97 = vpop.f32.mrf.mxu0
  %v98 = vadd.f32 %v78, %v97
  %99 = vdwg.mxu0
  %v100 = vmax.f32 %v98, 0.0
  %v101 = vld [vmem:[%s5] sm:$0xff]
  %v102 = vld [vmem:[%s5 + $0x8] sm:$0xff]
  %v103 = vld [vmem:[%s5 + $0x10] sm:$0xff]
  %v104 = vld [vmem:[%s5 + $0x18] sm:$0xff]
  %v105 = vld [vmem:[%s5 + $0x20] sm:$0xff]
  %v106 = vld [vmem:[%s5 + $0x28] sm:$0xff]
  %v107 = vld [vmem:[%s5 + $0x30] sm:$0xff]
  %v108 = vld [vmem:[%s5 + $0x38] sm:$0xff]
  %v109 = vld [vmem:[%s6] sm:$0x1]
  %v111 = vperm.slane %v109, 0
  %vm113 = vcmask 523264
  %v115 = vsel %vm113, %v100, 0
  %117 = vmatpush.msra.mxu0 0.0
  %118 = vmatpush.msra.mxu0 0.0
  %119 = vmatpush.msra.mxu0 0.0
  %120 = vmatpush.msra.mxu0 0.0
  %121 = vmatpush.msra.mxu0 0.0
  %122 = vmatpush.msra.mxu0 0.0
  %123 = vmatpush.msra.mxu0 0.0
  %124 = vmatpush.msra.mxu0 0.0
  %125 = vmatpush.msra.mxu0 %v108
  %126 = vmatpush.msra.mxu0 %v107
  %127 = vmatpush.msra.mxu0 %v106
  %128 = vmatpush.msra.mxu0 %v105
  %129 = vmatpush.msra.mxu0 %v104
  %130 = vmatpush.msra.mxu0 %v103
  %131 = vmatpush.msra.mxu0 %v102
  %132 = vmatpush.msra.mxu0 %v101
  %133 = vmatmul.f32.gmra.mxu0 %v115
  %v134 = vpop.f32.mrf.mxu0
  %v135 = vadd.f32 %v111, %v134
  %136 = vdwg.mxu0
  %vm137 = vcmask 31744
  %138 = vst.msk [vmem:[%s7] sm:$0xff] %vm137, %v135
  // Predicated region
  $region30: #{tpu_custom_call.1} parent=0 // pred_check
    _
  $region31: #{tpu_custom_call.1} parent=0 // pred_check_branch
    %140 = sbr.rel (0) target = $region33
  $region32: #{tpu_custom_call.1} parent=0 // pred_region
    _
  $region33: #{tpu_custom_call.1} parent=0 // pred_fallthru
    _
  // Predicated region
  $region34: #{tpu_custom_call.1} parent=0 // pred_check
    _
  $region35: #{tpu_custom_call.1} parent=0 // pred_check_branch
    %142 = sbr.rel (0) target = $region37
  $region36: #{tpu_custom_call.1} parent=0 // pred_region
    _
  $region37: #{tpu_custom_call.1} parent=0 // pred_fallthru
    _

</llo_original>
